<compile_context>
chip_gen: v7x
topology: tpu7x:2x2x1
jax: 0.10.0
libtpu: 0.0.40
codegen_flags: <defaults>
</compile_context>

<pallas_src>
import functools
import math

import jax
import jax.numpy as jnp
from jax.experimental import pallas as pl
from jax.experimental.pallas import tpu as pltpu


# ---------------------------------------------------------------------------
# Kernels
# ---------------------------------------------------------------------------
def _conv_stats_kernel(patches_ref, w_ref, b_ref, out_ref, sum_ref, ssq_ref):
    """One (batch n, HW-tile k) step: conv tile = W @ patches-tile + bias, plus
    per-channel sum / sum-of-squares accumulated across HW tiles (for InstanceNorm)."""
    k = pl.program_id(1)
    p = patches_ref[0]                                           # (9*C_in, T) f32
    acc = jnp.dot(w_ref[...], p, preferred_element_type=jnp.float32)
    acc = acc + b_ref[...]                                       # (C_out, T)
    out_ref[0] = acc.astype(out_ref.dtype)

    s1 = jnp.sum(acc, axis=1, keepdims=True)                     # (C_out, 1)
    s2 = jnp.sum(acc * acc, axis=1, keepdims=True)               # (C_out, 1)

    @pl.when(k == 0)
    def _():
        sum_ref[0] = s1
        ssq_ref[0] = s2

    @pl.when(k != 0)
    def _():
        sum_ref[0] = sum_ref[0] + s1
        ssq_ref[0] = ssq_ref[0] + s2


def _style_linear_kernel(s_ref, w_ref, b_ref, o_ref):
    """EqualLinear: out = style @ (scaled weight).T + bias (equal-lr scale applied in wrapper)."""
    o_ref[...] = (jnp.dot(s_ref[...], w_ref[...], preferred_element_type=jnp.float32)
                  + b_ref[...]).astype(o_ref.dtype)


def _adain_lrelu_kernel(x_ref, sum_ref, ssq_ref, gamma_ref, beta_ref, o_ref, *,
                        inv_hw, eps, neg_slope):
    """Fused InstanceNorm2d (from precomputed stats) + AdaIN affine + LeakyReLU per tile."""
    x = x_ref[0]                                                 # (C, T) f32
    mean = sum_ref[0] * inv_hw                                   # (C, 1)
    var = ssq_ref[0] * inv_hw - mean * mean                      # (C, 1)
    inv_std = jax.lax.rsqrt(var + eps)                           # EUP rsqrt, no divide
    scale = gamma_ref[0] * inv_std                               # (C, 1)
    shift = beta_ref[0] - mean * scale                           # (C, 1)
    y = x * scale + shift
    o_ref[0] = jnp.where(y >= 0, y, neg_slope * y).astype(o_ref.dtype)


# ---------------------------------------------------------------------------
# Wrappers
# ---------------------------------------------------------------------------
def _choose_lane_tile(hw, vmem_rows):
    """Largest 128-multiple lane tile dividing HW that keeps the double-buffered
    per-step block footprint modest; otherwise use the full (small) spatial axis."""
    budget = 8 * 1024 * 1024
    for t in (1024, 512, 256, 128):
        if hw % t == 0 and vmem_rows * t * 4 * 2 <= budget:
            return t
    return hw


def _conv_adain_lrelu(x, style, conv_w, conv_b, style_w, style_b, lane_tile=None):
    """One EqualConv2d -> AdaptiveInstanceNorm -> LeakyReLU(0.2) stage."""
    n, c_in, h, w = x.shape
    c_out, _, kh, kw = conv_w.shape
    hw = h * w
    f32 = jnp.float32

    # equal-lr scaling (what EqualLR's forward pre-hook does)
    conv_scale = math.sqrt(2.0 / (c_in * kh * kw))
    style_scale = math.sqrt(2.0 / style_w.shape[1])

    # (C_out, C_in, kh, kw) -> (C_out, kh*kw*C_in), tap-major / channel-minor
    w_mat = (conv_w.astype(f32) * conv_scale).transpose(0, 2, 3, 1).reshape(c_out, kh * kw * c_in)
    b_col = conv_b.astype(f32).reshape(c_out, 1)

    # im2col (wrapper-side layout plumbing; all conv FLOPs run in the Pallas kernel)
    ph, pw = (kh - 1) // 2, (kw - 1) // 2
    xp = jnp.pad(x.astype(f32), ((0, 0), (0, 0), (ph, ph), (pw, pw)))
    taps = [xp[:, :, dy:dy + h, dx:dx + w] for dy in range(kh) for dx in range(kw)]
    patches = jnp.stack(taps, axis=1).reshape(n, kh * kw * c_in, hw)

    t = lane_tile if lane_tile is not None else _choose_lane_tile(hw, kh * kw * c_in + 2 * c_out)
    assert hw % t == 0, "lane tile must divide H*W"
    nk = hw // t

    # --- conv matmul + bias, fused per-channel sum / sumsq over spatial -----
    conv_out, ch_sum, ch_ssq = pl.pallas_call(
        _conv_stats_kernel,
        out_shape=(jax.ShapeDtypeStruct((n, c_out, hw), f32),
                   jax.ShapeDtypeStruct((n, c_out, 1), f32),
                   jax.ShapeDtypeStruct((n, c_out, 1), f32)),
        grid_spec=pltpu.PrefetchScalarGridSpec(
            num_scalar_prefetch=0,
            grid=(n, nk),
            in_specs=[
                pl.BlockSpec((1, kh * kw * c_in, t), lambda i, k: (i, 0, k)),
                pl.BlockSpec((c_out, kh * kw * c_in), lambda i, k: (0, 0)),
                pl.BlockSpec((c_out, 1), lambda i, k: (0, 0)),
            ],
            out_specs=[
                pl.BlockSpec((1, c_out, t), lambda i, k: (i, 0, k)),
                pl.BlockSpec((1, c_out, 1), lambda i, k: (i, 0, 0)),
                pl.BlockSpec((1, c_out, 1), lambda i, k: (i, 0, 0)),
            ],
        ),
        compiler_params=pltpu.CompilerParams(
            dimension_semantics=("parallel", "arbitrary"),
            vmem_limit_bytes=32 * 1024 * 1024,
        ),
    )(patches, w_mat, b_col)

    # --- EqualLinear style projection -> gamma / beta ------------------------
    style_dim = style_w.shape[1]
    gb_flat = pl.pallas_call(
        _style_linear_kernel,
        out_shape=jax.ShapeDtypeStruct((n, 2 * c_out), f32),
        grid_spec=pltpu.PrefetchScalarGridSpec(
            num_scalar_prefetch=0,
            grid=(1,),
            in_specs=[
                pl.BlockSpec((n, style_dim), lambda i: (0, 0)),
                pl.BlockSpec((style_dim, 2 * c_out), lambda i: (0, 0)),
                pl.BlockSpec((1, 2 * c_out), lambda i: (0, 0)),
            ],
            out_specs=pl.BlockSpec((n, 2 * c_out), lambda i: (0, 0)),
        ),
        compiler_params=pltpu.CompilerParams(dimension_semantics=("arbitrary",)),
    )(style.astype(f32), (style_w.astype(f32) * style_scale).T,
      style_b.astype(f32).reshape(1, 2 * c_out))

    gamma = gb_flat[:, :c_out].reshape(n, c_out, 1)
    beta = gb_flat[:, c_out:].reshape(n, c_out, 1)

    # --- fused InstanceNorm + AdaIN affine + LeakyReLU -----------------------
    y = pl.pallas_call(
        functools.partial(_adain_lrelu_kernel, inv_hw=1.0 / hw, eps=1e-5, neg_slope=0.2),
        out_shape=jax.ShapeDtypeStruct((n, c_out, hw), f32),
        grid_spec=pltpu.PrefetchScalarGridSpec(
            num_scalar_prefetch=0,
            grid=(n, nk),
            in_specs=[
                pl.BlockSpec((1, c_out, t), lambda i, k: (i, 0, k)),
                pl.BlockSpec((1, c_out, 1), lambda i, k: (i, 0, 0)),
                pl.BlockSpec((1, c_out, 1), lambda i, k: (i, 0, 0)),
                pl.BlockSpec((1, c_out, 1), lambda i, k: (i, 0, 0)),
                pl.BlockSpec((1, c_out, 1), lambda i, k: (i, 0, 0)),
            ],
            out_specs=pl.BlockSpec((1, c_out, t), lambda i, k: (i, 0, k)),
        ),
        compiler_params=pltpu.CompilerParams(
            dimension_semantics=("parallel", "parallel"),
            vmem_limit_bytes=32 * 1024 * 1024,
        ),
    )(conv_out, ch_sum, ch_ssq, gamma, beta)

    return y.reshape(n, c_out, h, w)


def styled_conv_block2(x, style, params, lane_tile=None):
    """Forward pass of StyledConvBlock2: (conv -> adain -> lrelu) x 2, NCHW in/out."""
    out = _conv_adain_lrelu(x, style, params["conv1_w"], params["conv1_b"],
                            params["style1_w"], params["style1_b"], lane_tile)
    out = _conv_adain_lrelu(out, style, params["conv2_w"], params["conv2_b"],
                            params["style2_w"], params["style2_b"], lane_tile)
    return out


# ---------------------------------------------------------------------------
# Pure-JAX reference (same math as the PyTorch module)
# ---------------------------------------------------------------------------
def _reference(x, style, params):
    def equal_conv(v, w, b):
        scale = math.sqrt(2.0 / (w.shape[1] * w.shape[2] * w.shape[3]))
        y = jax.lax.conv_general_dilated(
            v, w * scale, window_strides=(1, 1), padding=((1, 1), (1, 1)),
            dimension_numbers=("NCHW", "OIHW", "NCHW"),
            precision=jax.lax.Precision.HIGHEST)
        return y + b.reshape(1, -1, 1, 1)

    def adain(v, s, sw, sb):
        scale = math.sqrt(2.0 / sw.shape[1])
        proj = s @ (sw * scale).T + sb
        c = v.shape[1]
        gamma = proj[:, :c].reshape(-1, c, 1, 1)
        beta = proj[:, c:].reshape(-1, c, 1, 1)
        mean = jnp.mean(v, axis=(2, 3), keepdims=True)
        var = jnp.var(v, axis=(2, 3), keepdims=True)
        return gamma * (v - mean) / jnp.sqrt(var + 1e-5) + beta

    def lrelu(v):
        return jnp.where(v >= 0, v, 0.2 * v)

    out = lrelu(adain(equal_conv(x, params["conv1_w"], params["conv1_b"]),
                      style, params["style1_w"], params["style1_b"]))
    out = lrelu(adain(equal_conv(out, params["conv2_w"], params["conv2_b"]),
                      style, params["style2_w"], params["style2_b"]))
    return out


if __name__ == "__main__":
    key = jax.random.PRNGKey(0)
    ks = jax.random.split(key, 6)
    n, c_in, c_out, h, w, style_dim = 2, 4, 4, 16, 16, 32

    x = jax.random.normal(ks[0], (n, c_in, h, w), jnp.float32)
    style = jax.random.normal(ks[1], (n, style_dim), jnp.float32)

    # Parameter init mirrors the PyTorch module: conv/linear weights ~ N(0,1),
    # conv biases zero, AdaIN style biases = [1]*C ++ [0]*C.
    params = {
        "conv1_w": jax.random.normal(ks[2], (c_out, c_in, 3, 3), jnp.float32),
        "conv1_b": jnp.zeros((c_out,), jnp.float32),
        "style1_w": jax.random.normal(ks[3], (2 * c_out, style_dim), jnp.float32),
        "style1_b": jnp.concatenate([jnp.ones((c_out,)), jnp.zeros((c_out,))]).astype(jnp.float32),
        "conv2_w": jax.random.normal(ks[4], (c_out, c_out, 3, 3), jnp.float32),
        "conv2_b": jnp.zeros((c_out,), jnp.float32),
        "style2_w": jax.random.normal(ks[5], (2 * c_out, style_dim), jnp.float32),
        "style2_b": jnp.concatenate([jnp.ones((c_out,)), jnp.zeros((c_out,))]).astype(jnp.float32),
    }

    # lane_tile=128 -> HW=256 splits into 2 lane tiles, exercising the tiled
    # pipeline and the cross-tile stats accumulation path.
    fwd = jax.jit(functools.partial(styled_conv_block2, lane_tile=128))
    y = jax.block_until_ready(fwd(x, style, params))

    ref = _reference(x, style, params)
    assert y.shape == (n, c_out, h, w)
    assert jnp.allclose(y, ref, atol=5e-3, rtol=5e-3), float(jnp.max(jnp.abs(y - ref)))

    print("KERNEL_OK")
</pallas_src>

<mosaic_0001>
module attributes {stable_mosaic.version = 11 : i64} {
  func.func @_style_linear_kernel(%arg0: i32, %arg1: memref<2x32xf32, #tpu.memory_space<vmem>>, %arg2: memref<32x8xf32, #tpu.memory_space<vmem>>, %arg3: memref<1x8xf32, #tpu.memory_space<vmem>>, %arg4: memref<2x8xf32, #tpu.memory_space<vmem>>) attributes {dimension_semantics = [#tpu.dimension_semantics<arbitrary>], iteration_bounds = array<i64: 1>, scalar_prefetch = 0 : i64, scratch_operands = 0 : i64, tpu.core_type = #tpu.core_type<tc>, window_params = [{pipeline_mode = #tpu.pipeline_mode<synchronous>, transform_indices = @transform_0, window_bounds = array<i64: 2, 32>}, {pipeline_mode = #tpu.pipeline_mode<synchronous>, transform_indices = @transform_1, window_bounds = array<i64: 32, 8>}, {pipeline_mode = #tpu.pipeline_mode<synchronous>, transform_indices = @transform_2, window_bounds = array<i64: 1, 8>}, {pipeline_mode = #tpu.pipeline_mode<synchronous>, transform_indices = @transform_3, window_bounds = array<i64: 2, 8>}]} {
    %c0 = arith.constant 0 : index
    %c0_0 = arith.constant 0 : index
    %0 = vector.load %arg1[%c0, %c0_0] : memref<2x32xf32, #tpu.memory_space<vmem>>, vector<2x32xf32>
    %c0_1 = arith.constant 0 : index
    %c0_2 = arith.constant 0 : index
    %1 = vector.load %arg2[%c0_1, %c0_2] : memref<32x8xf32, #tpu.memory_space<vmem>>, vector<32x8xf32>
    %cst = arith.constant dense<0.000000e+00> : vector<2x8xf32>
    %2 = tpu.matmul %0, %1, %cst {dimension_numbers = #tpu.dot_dimension_numbers<[1], [0], [0], [1], [0, 0, 1, 1], [], []>} : vector<2x32xf32>, vector<32x8xf32>, vector<2x8xf32> -> vector<2x8xf32>
    %c0_3 = arith.constant 0 : index
    %c0_4 = arith.constant 0 : index
    %3 = vector.load %arg3[%c0_3, %c0_4] : memref<1x8xf32, #tpu.memory_space<vmem>>, vector<1x8xf32>
    %4 = vector.broadcast %3 : vector<1x8xf32> to vector<2x8xf32>
    %5 = arith.addf %2, %4 : vector<2x8xf32>
    %c0_5 = arith.constant 0 : index
    %c0_6 = arith.constant 0 : index
    %6 = vector.load %arg4[%c0_5, %c0_6] : memref<2x8xf32, #tpu.memory_space<vmem>>, vector<2x8xf32>
    tpu.vector_store %arg4[%c0_5, %c0_6], %5 {strides = array<i32>} : memref<2x8xf32, #tpu.memory_space<vmem>>, vector<2x8xf32>,
    return
  }
  func.func @transform_0(%arg0: i32) -> (i32, i32) {
    %c0_i32 = arith.constant 0 : i32
    %c0_i32_0 = arith.constant 0 : i32
    %c0_i32_1 = arith.constant 0 : i32
    return %c0_i32, %c0_i32_0 : i32, i32
  }
  func.func @transform_1(%arg0: i32) -> (i32, i32) {
    %c0_i32 = arith.constant 0 : i32
    %c0_i32_0 = arith.constant 0 : i32
    %c0_i32_1 = arith.constant 0 : i32
    return %c0_i32, %c0_i32_0 : i32, i32
  }
  func.func @transform_2(%arg0: i32) -> (i32, i32) {
    %c0_i32 = arith.constant 0 : i32
    %c0_i32_0 = arith.constant 0 : i32
    %c0_i32_1 = arith.constant 0 : i32
    return %c0_i32, %c0_i32_0 : i32, i32
  }
  func.func @transform_3(%arg0: i32) -> (i32, i32) {
    %c0_i32 = arith.constant 0 : i32
    %c0_i32_0 = arith.constant 0 : i32
    %c0_i32_1 = arith.constant 0 : i32
    return %c0_i32, %c0_i32_0 : i32, i32
  }
}

module attributes {stable_mosaic.version = 11 : i64} {
  func.func @_adain_lrelu_kernel(%arg0: i32, %arg1: i32, %arg2: memref<1x4x128xf32, #tpu.memory_space<vmem>>, %arg3: memref<1x4x1xf32, #tpu.memory_space<vmem>>, %arg4: memref<1x4x1xf32, #tpu.memory_space<vmem>>, %arg5: memref<1x4x1xf32, #tpu.memory_space<vmem>>, %arg6: memref<1x4x1xf32, #tpu.memory_space<vmem>>, %arg7: memref<1x4x128xf32, #tpu.memory_space<vmem>>) attributes {dimension_semantics = [#tpu.dimension_semantics<parallel>, #tpu.dimension_semantics<parallel>], iteration_bounds = array<i64: 2, 2>, scalar_prefetch = 0 : i64, scratch_operands = 0 : i64, tpu.core_type = #tpu.core_type<tc>, window_params = [{transform_indices = @transform_0, window_bounds = array<i64: 1, 4, 128>}, {transform_indices = @transform_1, window_bounds = array<i64: 1, 4, 1>}, {transform_indices = @transform_2, window_bounds = array<i64: 1, 4, 1>}, {transform_indices = @transform_3, window_bounds = array<i64: 1, 4, 1>}, {transform_indices = @transform_4, window_bounds = array<i64: 1, 4, 1>}, {transform_indices = @transform_5, window_bounds = array<i64: 1, 4, 128>}]} {
    %c0 = arith.constant 0 : index
    %c0_0 = arith.constant 0 : index
    %c0_1 = arith.constant 0 : index
    %0 = vector.load %arg2[%c0, %c0_0, %c0_1] : memref<1x4x128xf32, #tpu.memory_space<vmem>>, vector<1x4x128xf32>
    %1 = vector.shape_cast %0 : vector<1x4x128xf32> to vector<4x128xf32>
    %c0_2 = arith.constant 0 : index
    %c0_3 = arith.constant 0 : index
    %c0_4 = arith.constant 0 : index
    %2 = vector.load %arg3[%c0_2, %c0_3, %c0_4] : memref<1x4x1xf32, #tpu.memory_space<vmem>>, vector<1x4x1xf32>
    %3 = vector.shape_cast %2 : vector<1x4x1xf32> to vector<4x1xf32>
    %cst = arith.constant 3.906250e-03 : f32
    %4 = vector.broadcast %cst : f32 to vector<4x1xf32>
    %5 = arith.mulf %3, %4 : vector<4x1xf32>
    %c0_5 = arith.constant 0 : index
    %c0_6 = arith.constant 0 : index
    %c0_7 = arith.constant 0 : index
    %6 = vector.load %arg4[%c0_5, %c0_6, %c0_7] : memref<1x4x1xf32, #tpu.memory_space<vmem>>, vector<1x4x1xf32>
    %7 = vector.shape_cast %6 : vector<1x4x1xf32> to vector<4x1xf32>
    %cst_8 = arith.constant 3.906250e-03 : f32
    %8 = vector.broadcast %cst_8 : f32 to vector<4x1xf32>
    %9 = arith.mulf %7, %8 : vector<4x1xf32>
    %10 = arith.mulf %5, %5 : vector<4x1xf32>
    %11 = arith.subf %9, %10 : vector<4x1xf32>
    %cst_9 = arith.constant 9.99999974E-6 : f32
    %12 = vector.broadcast %cst_9 : f32 to vector<4x1xf32>
    %13 = arith.addf %11, %12 : vector<4x1xf32>
    %14 = math.rsqrt %13 : vector<4x1xf32>
    %c0_10 = arith.constant 0 : index
    %c0_11 = arith.constant 0 : index
    %c0_12 = arith.constant 0 : index
    %15 = vector.load %arg5[%c0_10, %c0_11, %c0_12] : memref<1x4x1xf32, #tpu.memory_space<vmem>>, vector<1x4x1xf32>
    %16 = vector.shape_cast %15 : vector<1x4x1xf32> to vector<4x1xf32>
    %17 = arith.mulf %16, %14 : vector<4x1xf32>
    %c0_13 = arith.constant 0 : index
    %c0_14 = arith.constant 0 : index
    %c0_15 = arith.constant 0 : index
    %18 = vector.load %arg6[%c0_13, %c0_14, %c0_15] : memref<1x4x1xf32, #tpu.memory_space<vmem>>, vector<1x4x1xf32>
    %19 = vector.shape_cast %18 : vector<1x4x1xf32> to vector<4x1xf32>
    %20 = arith.mulf %5, %17 : vector<4x1xf32>
    %21 = arith.subf %19, %20 : vector<4x1xf32>
    %22 = vector.broadcast %17 : vector<4x1xf32> to vector<4x128xf32>
    %23 = arith.mulf %1, %22 : vector<4x128xf32>
    %24 = vector.broadcast %21 : vector<4x1xf32> to vector<4x128xf32>
    %25 = arith.addf %23, %24 : vector<4x128xf32>
    %cst_16 = arith.constant 0.000000e+00 : f32
    %26 = vector.broadcast %cst_16 : f32 to vector<4x128xf32>
    %27 = arith.cmpf oge, %25, %26 : vector<4x128xf32>
    %cst_17 = arith.constant 2.000000e-01 : f32
    %28 = vector.broadcast %cst_17 : f32 to vector<4x128xf32>
    %29 = arith.mulf %28, %25 : vector<4x128xf32>
    %30 = arith.select %27, %25, %29 : vector<4x128xi1>, vector<4x128xf32>
    %c0_18 = arith.constant 0 : index
    %c0_19 = arith.constant 0 : index
    %c0_20 = arith.constant 0 : index
    %31 = vector.load %arg7[%c0_18, %c0_19, %c0_20] : memref<1x4x128xf32, #tpu.memory_space<vmem>>, vector<1x4x128xf32>
    %32 = vector.shape_cast %31 : vector<1x4x128xf32> to vector<4x128xf32>
    %33 = vector.shape_cast %30 : vector<4x128xf32> to vector<1x4x128xf32>
    tpu.vector_store %arg7[%c0_18, %c0_19, %c0_20], %33 {strides = array<i32>} : memref<1x4x128xf32, #tpu.memory_space<vmem>>, vector<1x4x128xf32>,
    return
  }
  func.func @transform_0(%arg0: i32, %arg1: i32) -> (i32, i32, i32) {
    %c0_i32 = arith.constant 0 : i32
    %c0_i32_0 = arith.constant 0 : i32
    return %arg0, %c0_i32, %arg1 : i32, i32, i32
  }
  func.func @transform_1(%arg0: i32, %arg1: i32) -> (i32, i32, i32) {
    %c0_i32 = arith.constant 0 : i32
    %c0_i32_0 = arith.constant 0 : i32
    %c0_i32_1 = arith.constant 0 : i32
    return %arg0, %c0_i32, %c0_i32_0 : i32, i32, i32
  }
  func.func @transform_2(%arg0: i32, %arg1: i32) -> (i32, i32, i32) {
    %c0_i32 = arith.constant 0 : i32
    %c0_i32_0 = arith.constant 0 : i32
    %c0_i32_1 = arith.constant 0 : i32
    return %arg0, %c0_i32, %c0_i32_0 : i32, i32, i32
  }
  func.func @transform_3(%arg0: i32, %arg1: i32) -> (i32, i32, i32) {
    %c0_i32 = arith.constant 0 : i32
    %c0_i32_0 = arith.constant 0 : i32
    %c0_i32_1 = arith.constant 0 : i32
    return %arg0, %c0_i32, %c0_i32_0 : i32, i32, i32
  }
  func.func @transform_4(%arg0: i32, %arg1: i32) -> (i32, i32, i32) {
    %c0_i32 = arith.constant 0 : i32
    %c0_i32_0 = arith.constant 0 : i32
    %c0_i32_1 = arith.constant 0 : i32
    return %arg0, %c0_i32, %c0_i32_0 : i32, i32, i32
  }
  func.func @transform_5(%arg0: i32, %arg1: i32) -> (i32, i32, i32) {
    %c0_i32 = arith.constant 0 : i32
    %c0_i32_0 = arith.constant 0 : i32
    return %arg0, %c0_i32, %arg1 : i32, i32, i32
  }
}

module attributes {stable_mosaic.version = 11 : i64} {
  func.func @_conv_stats_kernel(%arg0: i32, %arg1: i32, %arg2: memref<1x36x128xf32, #tpu.memory_space<vmem>>, %arg3: memref<4x36xf32, #tpu.memory_space<vmem>>, %arg4: memref<4x1xf32, #tpu.memory_space<vmem>>, %arg5: memref<1x4x128xf32, #tpu.memory_space<vmem>>, %arg6: memref<1x4x1xf32, #tpu.memory_space<vmem>>, %arg7: memref<1x4x1xf32, #tpu.memory_space<vmem>>) attributes {dimension_semantics = [#tpu.dimension_semantics<parallel>, #tpu.dimension_semantics<arbitrary>], iteration_bounds = array<i64: 2, 2>, scalar_prefetch = 0 : i64, scratch_operands = 0 : i64, tpu.core_type = #tpu.core_type<tc>, window_params = [{transform_indices = @transform_0, window_bounds = array<i64: 1, 36, 128>}, {pipeline_mode = #tpu.pipeline_mode<synchronous>, transform_indices = @transform_1, window_bounds = array<i64: 4, 36>}, {pipeline_mode = #tpu.pipeline_mode<synchronous>, transform_indices = @transform_2, window_bounds = array<i64: 4, 1>}, {transform_indices = @transform_3, window_bounds = array<i64: 1, 4, 128>}, {transform_indices = @transform_4, window_bounds = array<i64: 1, 4, 1>}, {transform_indices = @transform_5, window_bounds = array<i64: 1, 4, 1>}]} {
    %c0 = arith.constant 0 : index
    %c0_0 = arith.constant 0 : index
    %c0_1 = arith.constant 0 : index
    %0 = vector.load %arg2[%c0, %c0_0, %c0_1] : memref<1x36x128xf32, #tpu.memory_space<vmem>>, vector<1x36x128xf32>
    %1 = vector.shape_cast %0 : vector<1x36x128xf32> to vector<36x128xf32>
    %c0_2 = arith.constant 0 : index
    %c0_3 = arith.constant 0 : index
    %2 = vector.load %arg3[%c0_2, %c0_3] : memref<4x36xf32, #tpu.memory_space<vmem>>, vector<4x36xf32>
    %cst = arith.constant dense<0.000000e+00> : vector<4x128xf32>
    %3 = tpu.matmul %2, %1, %cst {dimension_numbers = #tpu.dot_dimension_numbers<[1], [0], [0], [1], [0, 0, 1, 1], [], []>} : vector<4x36xf32>, vector<36x128xf32>, vector<4x128xf32> -> vector<4x128xf32>
    %c0_4 = arith.constant 0 : index
    %c0_5 = arith.constant 0 : index
    %4 = vector.load %arg4[%c0_4, %c0_5] : memref<4x1xf32, #tpu.memory_space<vmem>>, vector<4x1xf32>
    %5 = vector.broadcast %4 : vector<4x1xf32> to vector<4x128xf32>
    %6 = arith.addf %3, %5 : vector<4x128xf32>
    %c0_6 = arith.constant 0 : index
    %c0_7 = arith.constant 0 : index
    %c0_8 = arith.constant 0 : index
    %7 = vector.load %arg5[%c0_6, %c0_7, %c0_8] : memref<1x4x128xf32, #tpu.memory_space<vmem>>, vector<1x4x128xf32>
    %8 = vector.shape_cast %7 : vector<1x4x128xf32> to vector<4x128xf32>
    %9 = vector.shape_cast %6 : vector<4x128xf32> to vector<1x4x128xf32>
    tpu.vector_store %arg5[%c0_6, %c0_7, %c0_8], %9 {strides = array<i32>} : memref<1x4x128xf32, #tpu.memory_space<vmem>>, vector<1x4x128xf32>,
    %cst_9 = arith.constant dense<0.000000e+00> : vector<4xf32>
    %10 = vector.multi_reduction <add>, %6, %cst_9 [1] : vector<4x128xf32> to vector<4xf32>
    %11 = vector.shape_cast %10 : vector<4xf32> to vector<4x1xf32>
    %12 = arith.mulf %6, %6 : vector<4x128xf32>
    %cst_10 = arith.constant dense<0.000000e+00> : vector<4xf32>
    %13 = vector.multi_reduction <add>, %12, %cst_10 [1] : vector<4x128xf32> to vector<4xf32>
    %14 = vector.shape_cast %13 : vector<4xf32> to vector<4x1xf32>
    %c0_i32 = arith.constant 0 : i32
    %15 = arith.cmpi eq, %arg1, %c0_i32 : i32
    %16 = arith.extui %15 : i1 to i32
    %c0_i32_11 = arith.constant 0 : i32
    %17 = arith.cmpi ne, %16, %c0_i32_11 : i32
    scf.if %17 {
      %c0_14 = arith.constant 0 : index
      %c0_15 = arith.constant 0 : index
      %c0_16 = arith.constant 0 : index
      %21 = vector.load %arg6[%c0_14, %c0_15, %c0_16] : memref<1x4x1xf32, #tpu.memory_space<vmem>>, vector<1x4x1xf32>
      %22 = vector.shape_cast %21 : vector<1x4x1xf32> to vector<4x1xf32>
      %23 = vector.shape_cast %11 : vector<4x1xf32> to vector<1x4x1xf32>
      tpu.vector_store %arg6[%c0_14, %c0_15, %c0_16], %23 {strides = array<i32>} : memref<1x4x1xf32, #tpu.memory_space<vmem>>, vector<1x4x1xf32>,
      %c0_17 = arith.constant 0 : index
      %c0_18 = arith.constant 0 : index
      %c0_19 = arith.constant 0 : index
      %24 = vector.load %arg7[%c0_17, %c0_18, %c0_19] : memref<1x4x1xf32, #tpu.memory_space<vmem>>, vector<1x4x1xf32>
      %25 = vector.shape_cast %24 : vector<1x4x1xf32> to vector<4x1xf32>
      %26 = vector.shape_cast %14 : vector<4x1xf32> to vector<1x4x1xf32>
      tpu.vector_store %arg7[%c0_17, %c0_18, %c0_19], %26 {strides = array<i32>} : memref<1x4x1xf32, #tpu.memory_space<vmem>>, vector<1x4x1xf32>,
    } else {
    }
    %c0_i32_12 = arith.constant 0 : i32
    %18 = arith.cmpi ne, %arg1, %c0_i32_12 : i32
    %19 = arith.extui %18 : i1 to i32
    %c0_i32_13 = arith.constant 0 : i32
    %20 = arith.cmpi ne, %19, %c0_i32_13 : i32
    scf.if %20 {
      %c0_14 = arith.constant 0 : index
      %c0_15 = arith.constant 0 : index
      %c0_16 = arith.constant 0 : index
      %21 = vector.load %arg6[%c0_14, %c0_15, %c0_16] : memref<1x4x1xf32, #tpu.memory_space<vmem>>, vector<1x4x1xf32>
      %22 = vector.shape_cast %21 : vector<1x4x1xf32> to vector<4x1xf32>
      %23 = arith.addf %22, %11 : vector<4x1xf32>
      %c0_17 = arith.constant 0 : index
      %c0_18 = arith.constant 0 : index
      %c0_19 = arith.constant 0 : index
      %24 = vector.load %arg6[%c0_17, %c0_18, %c0_19] : memref<1x4x1xf32, #tpu.memory_space<vmem>>, vector<1x4x1xf32>
      %25 = vector.shape_cast %24 : vector<1x4x1xf32> to vector<4x1xf32>
      %26 = vector.shape_cast %23 : vector<4x1xf32> to vector<1x4x1xf32>
      tpu.vector_store %arg6[%c0_17, %c0_18, %c0_19], %26 {strides = array<i32>} : memref<1x4x1xf32, #tpu.memory_space<vmem>>, vector<1x4x1xf32>,
      %c0_20 = arith.constant 0 : index
      %c0_21 = arith.constant 0 : index
      %c0_22 = arith.constant 0 : index
      %27 = vector.load %arg7[%c0_20, %c0_21, %c0_22] : memref<1x4x1xf32, #tpu.memory_space<vmem>>, vector<1x4x1xf32>
      %28 = vector.shape_cast %27 : vector<1x4x1xf32> to vector<4x1xf32>
      %29 = arith.addf %28, %14 : vector<4x1xf32>
      %c0_23 = arith.constant 0 : index
      %c0_24 = arith.constant 0 : index
      %c0_25 = arith.constant 0 : index
      %30 = vector.load %arg7[%c0_23, %c0_24, %c0_25] : memref<1x4x1xf32, #tpu.memory_space<vmem>>, vector<1x4x1xf32>
      %31 = vector.shape_cast %30 : vector<1x4x1xf32> to vector<4x1xf32>
      %32 = vector.shape_cast %29 : vector<4x1xf32> to vector<1x4x1xf32>
      tpu.vector_store %arg7[%c0_23, %c0_24, %c0_25], %32 {strides = array<i32>} : memref<1x4x1xf32, #tpu.memory_space<vmem>>, vector<1x4x1xf32>,
    } else {
    }
    return
  }
  func.func @transform_0(%arg0: i32, %arg1: i32) -> (i32, i32, i32) {
    %c0_i32 = arith.constant 0 : i32
    %c0_i32_0 = arith.constant 0 : i32
    return %arg0, %c0_i32, %arg1 : i32, i32, i32
  }
  func.func @transform_1(%arg0: i32, %arg1: i32) -> (i32, i32) {
    %c0_i32 = arith.constant 0 : i32
    %c0_i32_0 = arith.constant 0 : i32
    %c0_i32_1 = arith.constant 0 : i32
    return %c0_i32, %c0_i32_0 : i32, i32
  }
  func.func @transform_2(%arg0: i32, %arg1: i32) -> (i32, i32) {
    %c0_i32 = arith.constant 0 : i32
    %c0_i32_0 = arith.constant 0 : i32
    %c0_i32_1 = arith.constant 0 : i32
    return %c0_i32, %c0_i32_0 : i32, i32
  }
  func.func @transform_3(%arg0: i32, %arg1: i32) -> (i32, i32, i32) {
    %c0_i32 = arith.constant 0 : i32
    %c0_i32_0 = arith.constant 0 : i32
    return %arg0, %c0_i32, %arg1 : i32, i32, i32
  }
  func.func @transform_4(%arg0: i32, %arg1: i32) -> (i32, i32, i32) {
    %c0_i32 = arith.constant 0 : i32
    %c0_i32_0 = arith.constant 0 : i32
    %c0_i32_1 = arith.constant 0 : i32
    return %arg0, %c0_i32, %c0_i32_0 : i32, i32, i32
  }
  func.func @transform_5(%arg0: i32, %arg1: i32) -> (i32, i32, i32) {
    %c0_i32 = arith.constant 0 : i32
    %c0_i32_0 = arith.constant 0 : i32
    %c0_i32_1 = arith.constant 0 : i32
    return %arg0, %c0_i32, %c0_i32_0 : i32, i32, i32
  }
}

</mosaic_0001>

<llo_original>
// kernel: styled_conv_block2.8
$region0: #{styled_conv_block2.8}
  #allocation0 [shape = 'u32[]', space=smem, size = 0x4, offset = 0x4, fixed_abs, tag = 'smem constant byte address 0x4 - core index']
  #allocation1 [shape = 'u32[144,128]{1,0:T(1,128)}', space=vmem, size = 0x12000, scoped, tag = 'internal scratch']
  %s0 = inlined_call_operand.vmem [shape: f32[2,4,256], index: 0, kind: input, shape index: {}]
  %s1 = inlined_call_operand.vmem [shape: f32[2,4,1], index: 1, kind: input, shape index: {}]
  %s2 = inlined_call_operand.vmem [shape: f32[2,4,1], index: 2, kind: input, shape index: {}]
  %s3 = inlined_call_operand.vmem [shape: f32[2,4,1], index: 3, kind: input, shape index: {}]
  %s4 = inlined_call_operand.vmem [shape: f32[2,4,1], index: 4, kind: input, shape index: {}]
  %s5 = inlined_call_operand.vmem [shape: f32[2,4,256], index: 5, kind: output, shape index: {}]
  %s6 = sld [smem:[#allocation0]]
  $region53: #{styled_conv_block2.8} parent=0
    _
  %s8 = ssub.s32 1, %s6
  %s9 = scalar_select 0, %s8, %s6
  loop: start=0, step=1, limit=6
  $region2: #{styled_conv_block2.8} parent=0 // loop_pre_header
    _
  $region3: #{styled_conv_block2.8} parent=0 // loop_header
    %s11 = sphi 0, %s15
    %p12 = scmp.ge.s32.totalorder %s11, 6
    %s18 = sphi 0, %s30
    %s19 = sphi 0, %s26
    %s20 = sphi 0, %s18
    %s21 = sphi 0, %s19
    %s22 = sphi 0, %s20
    %s23 = sphi 0, %s21
    %s35 = sphi 0, %s37
    %s38 = sphi 0, %s35
    %s39 = sphi 0, %s38
    %s55 = sphi 0, %s39
    %s61 = sphi 0, %s63
    %s64 = sphi 0, %s61
    %s65 = sphi 0, %s64
    %s81 = sphi 0, %s65
    %s87 = sphi 0, %s89
    %s90 = sphi 0, %s87
    %s91 = sphi 0, %s90
    %s107 = sphi 0, %s91
    %s113 = sphi 0, %s115
    %s116 = sphi 0, %s113
    %s117 = sphi 0, %s116
    %s133 = sphi 0, %s117
    %s139 = sphi 0, %s141
    %s142 = sphi 0, %s139
    %s143 = sphi 0, %s142
    %s159 = sphi 0, %s143
    %s167 = sphi 0, %s169
    %s170 = sphi 0, %s167
    %s171 = sphi 0, %s170
    %s187 = sphi 0, %s171
  $region4: #{styled_conv_block2.8} parent=0 // loop_header_branch
    %14 = sbr.rel (%p12) target = $region8
  $region5: #{styled_conv_block2.8} parent=0 // loop_body
    %s16 = ssub.s32 %s11, 1
    %s17 = ssub.s32 %s11, 2
    %s24 = sadd.s32 1, %s19
    %p25 = scmp.ge.s32.totalorder %s24, 2
    %s26 = scalar_select %p25, 0, %s24
    %s27 = sadd.s32 1, %s18
    %s28 = scalar_select %p25, %s27, %s18
    %p29 = scmp.ge.s32.totalorder %s28, 2
    %s30 = scalar_select %p29, 0, %s28
    %s31 = ssub.s32 %s18, %s30
    %s32 = ssub.s32 %s19, %s26
    %s33 = sor.u32 %s31, %s32
    %p34 = scmp.eq.s32.totalorder %s33, 0
    %s36 = sadd.s32 %s35, 1
    %s37 = scalar_select %p34, %s35, %s36
    %p40 = pneg %p34
    %p41 = scmp.eq.s32.totalorder %s11, 3
    %p42 = por %p40, %p41
    %p43 = scmp.ne.s32.totalorder %s35, %s38
    %p44 = scmp.eq.s32.totalorder %s11, 0
    %p45 = por %p43, %p44
    %p46 = scmp.ne.s32.totalorder %s35, %s38
    %p47 = scmp.eq.s32.totalorder %s16, 3
    %p48 = por %p46, %p47
    %p49 = scmp.ne.s32.totalorder %s38, %s39
    %p50 = scmp.eq.s32.totalorder %s16, 0
    %p51 = por %p49, %p50
    %p52 = scmp.ne.s32.totalorder %s38, %s39
    %p53 = scmp.eq.s32.totalorder %s17, 3
    %p54 = por %p52, %p53
    %p56 = scmp.ne.s32.totalorder %s39, %s55
    %p57 = scmp.eq.s32.totalorder %s17, 0
    %p58 = por %p56, %p57
    %s59 = ssub.s32 %s18, %s30
    %p60 = scmp.eq.s32.totalorder %s59, 0
    %s62 = sadd.s32 %s61, 1
    %s63 = scalar_select %p60, %s61, %s62
    %p66 = pneg %p60
    %p67 = scmp.eq.s32.totalorder %s11, 3
    %p68 = por %p66, %p67
    %p69 = scmp.ne.s32.totalorder %s61, %s64
    %p70 = scmp.eq.s32.totalorder %s11, 0
    %p71 = por %p69, %p70
    %p72 = scmp.ne.s32.totalorder %s61, %s64
    %p73 = scmp.eq.s32.totalorder %s16, 3
    %p74 = por %p72, %p73
    %p75 = scmp.ne.s32.totalorder %s64, %s65
    %p76 = scmp.eq.s32.totalorder %s16, 0
    %p77 = por %p75, %p76
    %p78 = scmp.ne.s32.totalorder %s64, %s65
    %p79 = scmp.eq.s32.totalorder %s17, 3
    %p80 = por %p78, %p79
    %p82 = scmp.ne.s32.totalorder %s65, %s81
    %p83 = scmp.eq.s32.totalorder %s17, 0
    %p84 = por %p82, %p83
    %s85 = ssub.s32 %s18, %s30
    %p86 = scmp.eq.s32.totalorder %s85, 0
    %s88 = sadd.s32 %s87, 1
    %s89 = scalar_select %p86, %s87, %s88
    %p92 = pneg %p86
    %p93 = scmp.eq.s32.totalorder %s11, 3
    %p94 = por %p92, %p93
    %p95 = scmp.ne.s32.totalorder %s87, %s90
    %p96 = scmp.eq.s32.totalorder %s11, 0
    %p97 = por %p95, %p96
    %p98 = scmp.ne.s32.totalorder %s87, %s90
    %p99 = scmp.eq.s32.totalorder %s16, 3
    %p100 = por %p98, %p99
    %p101 = scmp.ne.s32.totalorder %s90, %s91
    %p102 = scmp.eq.s32.totalorder %s16, 0
    %p103 = por %p101, %p102
    %p104 = scmp.ne.s32.totalorder %s90, %s91
    %p105 = scmp.eq.s32.totalorder %s17, 3
    %p106 = por %p104, %p105
    %p108 = scmp.ne.s32.totalorder %s91, %s107
    %p109 = scmp.eq.s32.totalorder %s17, 0
    %p110 = por %p108, %p109
    %s111 = ssub.s32 %s18, %s30
    %p112 = scmp.eq.s32.totalorder %s111, 0
    %s114 = sadd.s32 %s113, 1
    %s115 = scalar_select %p112, %s113, %s114
    %p118 = pneg %p112
    %p119 = scmp.eq.s32.totalorder %s11, 3
    %p120 = por %p118, %p119
    %p121 = scmp.ne.s32.totalorder %s113, %s116
    %p122 = scmp.eq.s32.totalorder %s11, 0
    %p123 = por %p121, %p122
    %p124 = scmp.ne.s32.totalorder %s113, %s116
    %p125 = scmp.eq.s32.totalorder %s16, 3
    %p126 = por %p124, %p125
    %p127 = scmp.ne.s32.totalorder %s116, %s117
    %p128 = scmp.eq.s32.totalorder %s16, 0
    %p129 = por %p127, %p128
    %p130 = scmp.ne.s32.totalorder %s116, %s117
    %p131 = scmp.eq.s32.totalorder %s17, 3
    %p132 = por %p130, %p131
    %p134 = scmp.ne.s32.totalorder %s117, %s133
    %p135 = scmp.eq.s32.totalorder %s17, 0
    %p136 = por %p134, %p135
    %s137 = ssub.s32 %s18, %s30
    %p138 = scmp.eq.s32.totalorder %s137, 0
    %s140 = sadd.s32 %s139, 1
    %s141 = scalar_select %p138, %s139, %s140
    %p144 = pneg %p138
    %p145 = scmp.eq.s32.totalorder %s11, 3
    %p146 = por %p144, %p145
    %p147 = scmp.ne.s32.totalorder %s139, %s142
    %p148 = scmp.eq.s32.totalorder %s11, 0
    %p149 = por %p147, %p148
    %p150 = scmp.ne.s32.totalorder %s139, %s142
    %p151 = scmp.eq.s32.totalorder %s16, 3
    %p152 = por %p150, %p151
    %p153 = scmp.ne.s32.totalorder %s142, %s143
    %p154 = scmp.eq.s32.totalorder %s16, 0
    %p155 = por %p153, %p154
    %p156 = scmp.ne.s32.totalorder %s142, %s143
    %p157 = scmp.eq.s32.totalorder %s17, 3
    %p158 = por %p156, %p157
    %p160 = scmp.ne.s32.totalorder %s143, %s159
    %p161 = scmp.eq.s32.totalorder %s17, 0
    %p162 = por %p160, %p161
    %s163 = ssub.s32 %s18, %s30
    %s164 = ssub.s32 %s19, %s26
    %s165 = sor.u32 %s163, %s164
    %p166 = scmp.eq.s32.totalorder %s165, 0
    %s168 = sadd.s32 %s167, 1
    %s169 = scalar_select %p166, %s167, %s168
    %p172 = pneg %p166
    %p173 = scmp.eq.s32.totalorder %s11, 3
    %p174 = por %p172, %p173
    %p175 = scmp.ne.s32.totalorder %s167, %s170
    %p176 = scmp.eq.s32.totalorder %s11, 0
    %p177 = por %p175, %p176
    %p178 = scmp.ne.s32.totalorder %s167, %s170
    %p179 = scmp.eq.s32.totalorder %s16, 3
    %p180 = por %p178, %p179
    %p181 = scmp.ne.s32.totalorder %s170, %s171
    %p182 = scmp.eq.s32.totalorder %s16, 0
    %p183 = por %p181, %p182
    %p184 = scmp.ne.s32.totalorder %s170, %s171
    %p185 = scmp.eq.s32.totalorder %s17, 3
    %p186 = por %p184, %p185
    %p188 = scmp.ne.s32.totalorder %s171, %s187
    %p189 = scmp.eq.s32.totalorder %s17, 0
    %p190 = por %p188, %p189
    %p191 = scmp.le.s32.totalorder 1, %s11
    %p192 = scmp.lt.s32.totalorder %s11, 5
    %p193 = pnand %p191, %p192
    %p194 = pneg %p193
    // Predicated region
    $region9: #{styled_conv_block2.8} parent=5 // pred_check
      _
    $region10: #{styled_conv_block2.8} parent=5 // pred_check_branch
      %196 = sbr.rel (%p193) target = $region12
    $region11: #{styled_conv_block2.8} parent=5 // pred_region
      %s197 = ssub.s32 %s11, 1
    $region12: #{styled_conv_block2.8} parent=5 // pred_fallthru
      _
    %p198 = scmp.lt.s32.totalorder %s11, 4
    // Predicated region
    $region13: #{styled_conv_block2.8} parent=5 // pred_check
      %p199 = pneg %p198
    $region14: #{styled_conv_block2.8} parent=5 // pred_check_branch
      %201 = sbr.rel (%p199) target = $region16
    $region15: #{styled_conv_block2.8} parent=5 // pred_region
      // Predicated region
      $region17: #{styled_conv_block2.8} parent=15 // pred_check
        %p202 = pneg %p45
      $region18: #{styled_conv_block2.8} parent=15 // pred_check_branch
        %204 = sbr.rel (%p202) target = $region20
      $region19: #{styled_conv_block2.8} parent=15 // pred_region
        %p205 = scmp.lt.s32.totalorder %s18, 1
        %s206 = scalar_select %p205, %s18, 1
        %p207 = scmp.lt.s32.totalorder %s19, 1
        %s208 = scalar_select %p207, %s19, 1
        %s209 = smul.addr %s206, 2
        %s210 = sadd.s32 %s208, %s209
        %s211 = smul.addr %s210, 4
        %s212 = scalar_lea.vmem %s0, %s211
      $region20: #{styled_conv_block2.8} parent=15 // pred_fallthru
        _
      // Predicated region
      $region21: #{styled_conv_block2.8} parent=15 // pred_check
        %p213 = pneg %p71
      $region22: #{styled_conv_block2.8} parent=15 // pred_check_branch
        %215 = sbr.rel (%p213) target = $region24
      $region23: #{styled_conv_block2.8} parent=15 // pred_region
        %p216 = scmp.lt.s32.totalorder %s18, 1
        %s217 = scalar_select %p216, %s18, 1
        %s218 = smul.addr %s217, 4
        %s219 = scalar_lea.vmem %s1, %s218
      $region24: #{styled_conv_block2.8} parent=15 // pred_fallthru
        _
      // Predicated region
      $region25: #{styled_conv_block2.8} parent=15 // pred_check
        %p220 = pneg %p97
      $region26: #{styled_conv_block2.8} parent=15 // pred_check_branch
        %222 = sbr.rel (%p220) target = $region28
      $region27: #{styled_conv_block2.8} parent=15 // pred_region
        %p223 = scmp.lt.s32.totalorder %s18, 1
        %s224 = scalar_select %p223, %s18, 1
        %s225 = smul.addr %s224, 4
        %s226 = scalar_lea.vmem %s2, %s225
      $region28: #{styled_conv_block2.8} parent=15 // pred_fallthru
        _
      // Predicated region
      $region29: #{styled_conv_block2.8} parent=15 // pred_check
        %p227 = pneg %p123
      $region30: #{styled_conv_block2.8} parent=15 // pred_check_branch
        %229 = sbr.rel (%p227) target = $region32
      $region31: #{styled_conv_block2.8} parent=15 // pred_region
        %p230 = scmp.lt.s32.totalorder %s18, 1
        %s231 = scalar_select %p230, %s18, 1
        %s232 = smul.addr %s231, 4
        %s233 = scalar_lea.vmem %s3, %s232
      $region32: #{styled_conv_block2.8} parent=15 // pred_fallthru
        _
      // Predicated region
      $region33: #{styled_conv_block2.8} parent=15 // pred_check
        %p234 = pneg %p149
      $region34: #{styled_conv_block2.8} parent=15 // pred_check_branch
        %236 = sbr.rel (%p234) target = $region36
      $region35: #{styled_conv_block2.8} parent=15 // pred_region
        %p237 = scmp.lt.s32.totalorder %s18, 1
        %s238 = scalar_select %p237, %s18, 1
        %s239 = smul.addr %s238, 4
        %s240 = scalar_lea.vmem %s4, %s239
      $region36: #{styled_conv_block2.8} parent=15 // pred_fallthru
        _
    $region16: #{styled_conv_block2.8} parent=5 // pred_fallthru
      _
    %p241 = scmp.le.s32.totalorder 1, %s11
    %p242 = scmp.lt.s32.totalorder %s11, 5
    %p243 = pnand %p241, %p242
    %p244 = pneg %p243
    // Predicated region
    $region37: #{styled_conv_block2.8} parent=5 // pred_check
      _
    $region38: #{styled_conv_block2.8} parent=5 // pred_check_branch
      %246 = sbr.rel (%p243) target = $region40
    $region39: #{styled_conv_block2.8} parent=5 // pred_region
      %s247 = ssub.s32 %s11, 1
      %p248 = scmp.lt.s32.totalorder %s20, 1
      %s249 = scalar_select %p248, %s20, 1
      %p250 = scmp.lt.s32.totalorder %s21, 1
      %s251 = scalar_select %p250, %s21, 1
      %s252 = smul.addr %s249, 2
      %s253 = sadd.s32 %s251, %s252
      %s254 = smul.addr %s253, 4
      %s255 = scalar_lea.vmem %s0, %s254
      %p256 = pneg %p51
      %p257 = pneg %p48
      %p258 = scmp.lt.s32.totalorder %s20, 1
      %s259 = scalar_select %p258, %s20, 1
      %s260 = smul.addr %s259, 4
      %s261 = scalar_lea.vmem %s1, %s260
      %p262 = pneg %p77
      %p263 = pneg %p74
      %p264 = scmp.lt.s32.totalorder %s20, 1
      %s265 = scalar_select %p264, %s20, 1
      %s266 = smul.addr %s265, 4
      %s267 = scalar_lea.vmem %s2, %s266
      %p268 = pneg %p103
      %p269 = pneg %p100
      %p270 = scmp.lt.s32.totalorder %s20, 1
      %s271 = scalar_select %p270, %s20, 1
      %s272 = smul.addr %s271, 4
      %s273 = scalar_lea.vmem %s3, %s272
      %p274 = pneg %p129
      %p275 = pneg %p126
      %p276 = scmp.lt.s32.totalorder %s20, 1
      %s277 = scalar_select %p276, %s20, 1
      %s278 = smul.addr %s277, 4
      %s279 = scalar_lea.vmem %s4, %s278
      %p280 = pneg %p155
      %p281 = pneg %p152
      %p282 = pneg %p183
      %p283 = pneg %p180
      %p284 = scmp.lt.s32.totalorder %s20, 1
      %s285 = scalar_select %p284, %s20, 1
      %p286 = scmp.lt.s32.totalorder %s21, 1
      %s287 = scalar_select %p286, %s21, 1
      %s288 = smul.addr %s285, 2
      %s289 = sadd.s32 %s287, %s288
      %s290 = smul.addr %s289, 4
      %s291 = scalar_lea.vmem %s5, %s290
      %p292 = scmp.lt.s32.totalorder %s20, 1
      %s293 = scalar_select %p292, %s20, 1
      %p294 = scmp.lt.s32.totalorder %s21, 1
      %s295 = scalar_select %p294, %s21, 1
      %s296 = smul.addr %s293, 2
      %s297 = sadd.s32 %s295, %s296
      %s298 = smul.addr %s297, 4
      %s299 = scalar_lea.vmem %s0, %s298
      %p300 = scmp.lt.s32.totalorder %s20, 1
      %s301 = scalar_select %p300, %s20, 1
      %s302 = smul.addr %s301, 4
      %s303 = scalar_lea.vmem %s1, %s302
      %p304 = scmp.lt.s32.totalorder %s20, 1
      %s305 = scalar_select %p304, %s20, 1
      %s306 = smul.addr %s305, 4
      %s307 = scalar_lea.vmem %s2, %s306
      %p308 = scmp.lt.s32.totalorder %s20, 1
      %s309 = scalar_select %p308, %s20, 1
      %s310 = smul.addr %s309, 4
      %s311 = scalar_lea.vmem %s3, %s310
      %p312 = scmp.lt.s32.totalorder %s20, 1
      %s313 = scalar_select %p312, %s20, 1
      %s314 = smul.addr %s313, 4
      %s315 = scalar_lea.vmem %s4, %s314
      %p316 = scmp.lt.s32.totalorder %s20, 1
      %s317 = scalar_select %p316, %s20, 1
      %p318 = scmp.lt.s32.totalorder %s21, 1
      %s319 = scalar_select %p318, %s21, 1
      %s320 = smul.addr %s317, 2
      %s321 = sadd.s32 %s319, %s320
      %s322 = smul.addr %s321, 4
      %s323 = scalar_lea.vmem %s5, %s322
      %v324 = vld [vmem:[%s299] sm:$0xf]
      %v325 = vld [vmem:[%s303] sm:$0xf]
      %v326 = vmul.f32 %v325, 0.00390625
      %v327 = vld [vmem:[%s307] sm:$0xf]
      %v328 = vmul.f32 %v327, 0.00390625
      %v329 = vmul.f32 %v326, %v326
      %v330 = vsub.f32 %v328, %v329
      %v331 = vadd.f32 %v330, 1e-05
      %v332 = vrsqrt.pop %v331
      %v333 = vld [vmem:[%s311] sm:$0xf]
      %v334 = vmul.f32 %v333, %v332
      %v335 = vld [vmem:[%s315] sm:$0xf]
      %v336 = vmul.f32 %v326, %v334
      %v337 = vsub.f32 %v335, %v336
      %339 = vset.pattern.permute.xlu0 0
      %340 = vperm.xlu0 %339, %v334
      %v341 = vpop.permute.xlu0 %340
      %v343 = vmul.f32 %v324, %v341
      %345 = vset.pattern.permute.xlu0 0
      %346 = vperm.xlu0 %345, %v337
      %v347 = vpop.permute.xlu0 %346
      %v349 = vadd.f32 %v343, %v347
      %vm350 = vcmp.ge.f32.partialorder %v349, 0.0
      %v351 = vmul.f32 %v349, 0.2
      %v352 = vsel %vm350, %v349, %v351
      %353 = vst [vmem:[%s323] sm:$0xf] %v352
      %p354 = scmp.lt.s32.totalorder %s20, 1
      %s355 = scalar_select %p354, %s20, 1
      %p356 = scmp.lt.s32.totalorder %s21, 1
      %s357 = scalar_select %p356, %s21, 1
      %s358 = smul.addr %s355, 2
      %s359 = sadd.s32 %s357, %s358
      %s360 = smul.addr %s359, 4
      %s361 = scalar_lea.vmem %s5, %s360
      // Predicated region
      $region41: #{styled_conv_block2.8} parent=39 // pred_check
        %p362 = pneg %p180
      $region42: #{styled_conv_block2.8} parent=39 // pred_check_branch
        %364 = sbr.rel (%p362) target = $region44
      $region43: #{styled_conv_block2.8} parent=39 // pred_region
        _
      $region44: #{styled_conv_block2.8} parent=39 // pred_fallthru
        _
    $region40: #{styled_conv_block2.8} parent=5 // pred_fallthru
      _
    %p365 = scmp.le.s32.totalorder 2, %s11
    // Predicated region
    $region45: #{styled_conv_block2.8} parent=5 // pred_check
      %p366 = pneg %p365
    $region46: #{styled_conv_block2.8} parent=5 // pred_check_branch
      %368 = sbr.rel (%p366) target = $region48
    $region47: #{styled_conv_block2.8} parent=5 // pred_region
      %s369 = ssub.s32 %s11, 2
      // Predicated region
      $region49: #{styled_conv_block2.8} parent=47 // pred_check
        %p370 = pneg %p186
      $region50: #{styled_conv_block2.8} parent=47 // pred_check_branch
        %372 = sbr.rel (%p370) target = $region52
      $region51: #{styled_conv_block2.8} parent=47 // pred_region
        %p373 = scmp.lt.s32.totalorder %s22, 1
        %s374 = scalar_select %p373, %s22, 1
        %p375 = scmp.lt.s32.totalorder %s23, 1
        %s376 = scalar_select %p375, %s23, 1
        %s377 = smul.addr %s374, 2
        %s378 = sadd.s32 %s376, %s377
        %s379 = smul.addr %s378, 4
        %s380 = scalar_lea.vmem %s5, %s379
      $region52: #{styled_conv_block2.8} parent=47 // pred_fallthru
        _
    $region48: #{styled_conv_block2.8} parent=5 // pred_fallthru
      _
  $region6: #{styled_conv_block2.8} parent=0 // loop_footer
    %s15 = sadd.s32 1, %s11
  $region7: #{styled_conv_block2.8} parent=0 // loop_footer_branch
    %10 = sbr.rel target = $region3
  $region8: #{styled_conv_block2.8} parent=0 // loop_exit
    _

// kernel: styled_conv_block2.6
$region0: #{styled_conv_block2.6}
  #allocation0 [shape = 'u32[]', space=smem, size = 0x4, offset = 0x4, fixed_abs, tag = 'smem constant byte address 0x4 - core index']
  #allocation1 [shape = 'u32[144,128]{1,0:T(1,128)}', space=vmem, size = 0x12000, scoped, tag = 'internal scratch']
  %s0 = inlined_call_operand.vmem [shape: f32[2,36,256], index: 0, kind: input, shape index: {}]
  %s1 = inlined_call_operand.vmem [shape: f32[4,36], index: 1, kind: input, shape index: {}]
  %s2 = inlined_call_operand.vmem [shape: f32[4,1], index: 2, kind: input, shape index: {}]
  %s3 = inlined_call_operand.vmem [shape: f32[2,4,256], index: 3, kind: output, shape index: {0}]
  %s4 = inlined_call_operand.vmem [shape: f32[2,4,1], index: 4, kind: output, shape index: {1}]
  %s5 = inlined_call_operand.vmem [shape: f32[2,4,1], index: 5, kind: output, shape index: {2}]
  %6 = xla_tuple %s3, %s4, %s5
  %s7 = sld [smem:[#allocation0]]
  $region107: #{styled_conv_block2.6} parent=0
    _
  %s9 = ssub.s32 1, %s7
  %s10 = scalar_select 0, %s9, %s7
  $region1: #{styled_conv_block2.6} parent=0
    #allocation2 [shape = 'u8[40960]{0}', space=vmem, size = 0xa000, scoped, tag = 'input window, operand 0']
    loop: start=0, step=1, limit=6
    $region2: #{styled_conv_block2.6} parent=1 // loop_pre_header
      _
    $region3: #{styled_conv_block2.6} parent=1 // loop_header
      %s12 = sphi 0, %s16
      %p13 = scmp.ge.s32.totalorder %s12, 6
      %s19 = sphi 0, %s31
      %s20 = sphi 0, %s27
      %s21 = sphi 0, %s19
      %s22 = sphi 0, %s20
      %s23 = sphi 0, %s21
      %s24 = sphi 0, %s22
      %s36 = sphi 0, %s38
      %s39 = sphi 0, %s36
      %s40 = sphi 0, %s39
      %s56 = sphi 0, %s40
      %s60 = sphi 0, %s60
      %s62 = sphi 0, %s60
      %s63 = sphi 0, %s62
      %s77 = sphi 0, %s63
      %s81 = sphi 0, %s81
      %s83 = sphi 0, %s81
      %s84 = sphi 0, %s83
      %s98 = sphi 0, %s84
      %s106 = sphi 0, %s108
      %s109 = sphi 0, %s106
      %s110 = sphi 0, %s109
      %s126 = sphi 0, %s110
      %s132 = sphi 0, %s134
      %s135 = sphi 0, %s132
      %s136 = sphi 0, %s135
      %s152 = sphi 0, %s136
      %s158 = sphi 0, %s160
      %s161 = sphi 0, %s158
      %s162 = sphi 0, %s161
      %s178 = sphi 0, %s162
    $region4: #{styled_conv_block2.6} parent=1 // loop_header_branch
      %15 = sbr.rel (%p13) target = $region8
    $region5: #{styled_conv_block2.6} parent=1 // loop_body
      %s17 = ssub.s32 %s12, 1
      %s18 = ssub.s32 %s12, 2
      %s25 = sadd.s32 1, %s20
      %p26 = scmp.ge.s32.totalorder %s25, 2
      %s27 = scalar_select %p26, 0, %s25
      %s28 = sadd.s32 1, %s19
      %s29 = scalar_select %p26, %s28, %s19
      %p30 = scmp.ge.s32.totalorder %s29, 2
      %s31 = scalar_select %p30, 0, %s29
      %s32 = ssub.s32 %s19, %s31
      %s33 = ssub.s32 %s20, %s27
      %s34 = sor.u32 %s32, %s33
      %p35 = scmp.eq.s32.totalorder %s34, 0
      %s37 = sadd.s32 %s36, 1
      %s38 = scalar_select %p35, %s36, %s37
      %p41 = pneg %p35
      %p42 = scmp.eq.s32.totalorder %s12, 3
      %p43 = por %p41, %p42
      %p44 = scmp.ne.s32.totalorder %s36, %s39
      %p45 = scmp.eq.s32.totalorder %s12, 0
      %p46 = por %p44, %p45
      %p47 = scmp.ne.s32.totalorder %s36, %s39
      %p48 = scmp.eq.s32.totalorder %s17, 3
      %p49 = por %p47, %p48
      %p50 = scmp.ne.s32.totalorder %s39, %s40
      %p51 = scmp.eq.s32.totalorder %s17, 0
      %p52 = por %p50, %p51
      %p53 = scmp.ne.s32.totalorder %s39, %s40
      %p54 = scmp.eq.s32.totalorder %s18, 3
      %p55 = por %p53, %p54
      %p57 = scmp.ne.s32.totalorder %s40, %s56
      %p58 = scmp.eq.s32.totalorder %s18, 0
      %p59 = por %p57, %p58
      %s61 = sadd.s32 %s60, 1
      %p64 = scmp.eq.s32.totalorder %s12, 3
      %p65 = scmp.ne.s32.totalorder %s60, %s62
      %p66 = scmp.eq.s32.totalorder %s12, 0
      %p67 = por %p65, %p66
      %p68 = scmp.ne.s32.totalorder %s60, %s62
      %p69 = scmp.eq.s32.totalorder %s17, 3
      %p70 = por %p68, %p69
      %p71 = scmp.ne.s32.totalorder %s62, %s63
      %p72 = scmp.eq.s32.totalorder %s17, 0
      %p73 = por %p71, %p72
      %p74 = scmp.ne.s32.totalorder %s62, %s63
      %p75 = scmp.eq.s32.totalorder %s18, 3
      %p76 = por %p74, %p75
      %p78 = scmp.ne.s32.totalorder %s63, %s77
      %p79 = scmp.eq.s32.totalorder %s18, 0
      %p80 = por %p78, %p79
      %s82 = sadd.s32 %s81, 1
      %p85 = scmp.eq.s32.totalorder %s12, 3
      %p86 = scmp.ne.s32.totalorder %s81, %s83
      %p87 = scmp.eq.s32.totalorder %s12, 0
      %p88 = por %p86, %p87
      %p89 = scmp.ne.s32.totalorder %s81, %s83
      %p90 = scmp.eq.s32.totalorder %s17, 3
      %p91 = por %p89, %p90
      %p92 = scmp.ne.s32.totalorder %s83, %s84
      %p93 = scmp.eq.s32.totalorder %s17, 0
      %p94 = por %p92, %p93
      %p95 = scmp.ne.s32.totalorder %s83, %s84
      %p96 = scmp.eq.s32.totalorder %s18, 3
      %p97 = por %p95, %p96
      %p99 = scmp.ne.s32.totalorder %s84, %s98
      %p100 = scmp.eq.s32.totalorder %s18, 0
      %p101 = por %p99, %p100
      %s102 = ssub.s32 %s19, %s31
      %s103 = ssub.s32 %s20, %s27
      %s104 = sor.u32 %s102, %s103
      %p105 = scmp.eq.s32.totalorder %s104, 0
      %s107 = sadd.s32 %s106, 1
      %s108 = scalar_select %p105, %s106, %s107
      %p111 = pneg %p105
      %p112 = scmp.eq.s32.totalorder %s12, 3
      %p113 = por %p111, %p112
      %p114 = scmp.ne.s32.totalorder %s106, %s109
      %p115 = scmp.eq.s32.totalorder %s12, 0
      %p116 = por %p114, %p115
      %p117 = scmp.ne.s32.totalorder %s106, %s109
      %p118 = scmp.eq.s32.totalorder %s17, 3
      %p119 = por %p117, %p118
      %p120 = scmp.ne.s32.totalorder %s109, %s110
      %p121 = scmp.eq.s32.totalorder %s17, 0
      %p122 = por %p120, %p121
      %p123 = scmp.ne.s32.totalorder %s109, %s110
      %p124 = scmp.eq.s32.totalorder %s18, 3
      %p125 = por %p123, %p124
      %p127 = scmp.ne.s32.totalorder %s110, %s126
      %p128 = scmp.eq.s32.totalorder %s18, 0
      %p129 = por %p127, %p128
      %s130 = ssub.s32 %s19, %s31
      %p131 = scmp.eq.s32.totalorder %s130, 0
      %s133 = sadd.s32 %s132, 1
      %s134 = scalar_select %p131, %s132, %s133
      %p137 = pneg %p131
      %p138 = scmp.eq.s32.totalorder %s12, 3
      %p139 = por %p137, %p138
      %p140 = scmp.ne.s32.totalorder %s132, %s135
      %p141 = scmp.eq.s32.totalorder %s12, 0
      %p142 = por %p140, %p141
      %p143 = scmp.ne.s32.totalorder %s132, %s135
      %p144 = scmp.eq.s32.totalorder %s17, 3
      %p145 = por %p143, %p144
      %p146 = scmp.ne.s32.totalorder %s135, %s136
      %p147 = scmp.eq.s32.totalorder %s17, 0
      %p148 = por %p146, %p147
      %p149 = scmp.ne.s32.totalorder %s135, %s136
      %p150 = scmp.eq.s32.totalorder %s18, 3
      %p151 = por %p149, %p150
      %p153 = scmp.ne.s32.totalorder %s136, %s152
      %p154 = scmp.eq.s32.totalorder %s18, 0
      %p155 = por %p153, %p154
      %s156 = ssub.s32 %s19, %s31
      %p157 = scmp.eq.s32.totalorder %s156, 0
      %s159 = sadd.s32 %s158, 1
      %s160 = scalar_select %p157, %s158, %s159
      %p163 = pneg %p157
      %p164 = scmp.eq.s32.totalorder %s12, 3
      %p165 = por %p163, %p164
      %p166 = scmp.ne.s32.totalorder %s158, %s161
      %p167 = scmp.eq.s32.totalorder %s12, 0
      %p168 = por %p166, %p167
      %p169 = scmp.ne.s32.totalorder %s158, %s161
      %p170 = scmp.eq.s32.totalorder %s17, 3
      %p171 = por %p169, %p170
      %p172 = scmp.ne.s32.totalorder %s161, %s162
      %p173 = scmp.eq.s32.totalorder %s17, 0
      %p174 = por %p172, %p173
      %p175 = scmp.ne.s32.totalorder %s161, %s162
      %p176 = scmp.eq.s32.totalorder %s18, 3
      %p177 = por %p175, %p176
      %p179 = scmp.ne.s32.totalorder %s162, %s178
      %p180 = scmp.eq.s32.totalorder %s18, 0
      %p181 = por %p179, %p180
      %p182 = scmp.le.s32.totalorder 1, %s12
      %p183 = scmp.lt.s32.totalorder %s12, 5
      %p184 = pnand %p182, %p183
      %p185 = pneg %p184
      // Predicated region
      $region9: #{styled_conv_block2.6} parent=5 // pred_check
        _
      $region10: #{styled_conv_block2.6} parent=5 // pred_check_branch
        %187 = sbr.rel (%p184) target = $region12
      $region11: #{styled_conv_block2.6} parent=5 // pred_region
        %s188 = ssub.s32 %s12, 1
        // Predicated region
        $region13: #{styled_conv_block2.6} parent=11 // pred_check
          %p189 = pneg %p73
        $region14: #{styled_conv_block2.6} parent=11 // pred_check_branch
          %191 = sbr.rel (%p189) target = $region16
        $region15: #{styled_conv_block2.6} parent=11 // pred_region
          _
        $region16: #{styled_conv_block2.6} parent=11 // pred_fallthru
          _
        // Predicated region
        $region17: #{styled_conv_block2.6} parent=11 // pred_check
          %p192 = pneg %p94
        $region18: #{styled_conv_block2.6} parent=11 // pred_check_branch
          %194 = sbr.rel (%p192) target = $region20
        $region19: #{styled_conv_block2.6} parent=11 // pred_region
          _
        $region20: #{styled_conv_block2.6} parent=11 // pred_fallthru
          _
      $region12: #{styled_conv_block2.6} parent=5 // pred_fallthru
        _
      %p195 = scmp.lt.s32.totalorder %s12, 4
      // Predicated region
      $region21: #{styled_conv_block2.6} parent=5 // pred_check
        %p196 = pneg %p195
      $region22: #{styled_conv_block2.6} parent=5 // pred_check_branch
        %198 = sbr.rel (%p196) target = $region24
      $region23: #{styled_conv_block2.6} parent=5 // pred_region
        // Predicated region
        $region25: #{styled_conv_block2.6} parent=23 // pred_check
          %p199 = pneg %p46
        $region26: #{styled_conv_block2.6} parent=23 // pred_check_branch
          %201 = sbr.rel (%p199) target = $region28
        $region27: #{styled_conv_block2.6} parent=23 // pred_region
          %s202 = sand.u32 %s36, 1
          %s203 = sand.u32 %s36, 1
          %s204 = smul.addr %s203, 40
          %s205 = scalar_lea.vmem [#allocation2], %s204
          %s206 = smul.addr %s19, 10
          %s207 = sadd.s32 %s20, %s206
          %s208 = smul.addr %s207, 8
          %s209 = scalar_lea.vmem %s0, %s208
          // Predicated region
          $region29: #{styled_conv_block2.6} parent=27 // pred_check
            _
          $region30: #{styled_conv_block2.6} parent=27 // pred_check_branch
            %211 = sbr.rel (0) target = $region32
          $region31: #{styled_conv_block2.6} parent=27 // pred_region
            // Predicated region
            $region33: #{styled_conv_block2.6} parent=31 // pred_check
              _
            $region34: #{styled_conv_block2.6} parent=31 // pred_check_branch
              %213 = sbr.rel (0) target = $region36
            $region35: #{styled_conv_block2.6} parent=31 // pred_region
              // Predicated region
              $region48: #{styled_conv_block2.6} parent=35 // pred_check
                _
              $region49: #{styled_conv_block2.6} parent=35 // pred_check_branch
                %236 = sbr.rel (0) target = $region51
              $region50: #{styled_conv_block2.6} parent=35 // pred_region
                loop: start=0, step=1, limit=1
                $region52: #{styled_conv_block2.6} parent=50 // loop_pre_header
                  _
                $region53: #{styled_conv_block2.6} parent=50 // loop_header
                  %s238 = sphi 0, %s242
                  %p239 = scmp.ge.s32.totalorder %s238, 1
                  %s243 = sphi %s209, %s209
                  %s244 = sphi %s205, %s205
                $region54: #{styled_conv_block2.6} parent=50 // loop_header_branch
                  %241 = sbr.rel (%p239) target = $region58
                $region55: #{styled_conv_block2.6} parent=50 // loop_body
                  %v245 = vld [vmem:[%s243] sm:$0xff]
                  %246 = vst [vmem:[%s244] sm:$0xff] %v245
                  %v247 = vld [vmem:[%s243 + $0x10] sm:$0xff]
                  %248 = vst [vmem:[%s244 + $0x8] sm:$0xff] %v247
                  %v249 = vld [vmem:[%s243 + $0x20] sm:$0xff]
                  %250 = vst [vmem:[%s244 + $0x10] sm:$0xff] %v249
                  %v251 = vld [vmem:[%s243 + $0x30] sm:$0xff]
                  %252 = vst [vmem:[%s244 + $0x18] sm:$0xff] %v251
                  %v253 = vld [vmem:[%s243 + $0x40] sm:$0xff]
                  %254 = vst [vmem:[%s244 + $0x20] sm:$0xff] %v253
                $region56: #{styled_conv_block2.6} parent=50 // loop_footer
                  %s242 = sadd.s32 1, %s238
                $region57: #{styled_conv_block2.6} parent=50 // loop_footer_branch
                  %237 = sbr.rel target = $region53
                $region58: #{styled_conv_block2.6} parent=50 // loop_exit
                  _
              $region51: #{styled_conv_block2.6} parent=35 // pred_fallthru
                _
              // Predicated region
              $region59: #{styled_conv_block2.6} parent=35 // pred_check
                _
              $region60: #{styled_conv_block2.6} parent=35 // pred_check_branch
                %256 = sbr.rel target = $region62
              $region61: #{styled_conv_block2.6} parent=35 // pred_region
                _
              $region62: #{styled_conv_block2.6} parent=35 // pred_fallthru
                _
            $region36: #{styled_conv_block2.6} parent=31 // pred_fallthru
              _
            // Predicated region
            $region37: #{styled_conv_block2.6} parent=31 // pred_check
              _
            $region38: #{styled_conv_block2.6} parent=31 // pred_check_branch
              %215 = sbr.rel target = $region40
            $region39: #{styled_conv_block2.6} parent=31 // pred_region
              loop: start=0, step=1, limit=1
              $region41: #{styled_conv_block2.6} parent=39 // loop_pre_header
                _
              $region42: #{styled_conv_block2.6} parent=39 // loop_header
                %s218 = sphi 0, %s222
                %p219 = scmp.ge.s32.totalorder %s218, 1
                %s223 = sphi %s209, %s209
                %s224 = sphi %s205, %s205
              $region43: #{styled_conv_block2.6} parent=39 // loop_header_branch
                %221 = sbr.rel (%p219) target = $region47
              $region44: #{styled_conv_block2.6} parent=39 // loop_body
                %v225 = vld [vmem:[%s223] sm:$0xff]
                %226 = vst [vmem:[%s224] sm:$0xff] %v225
                %v227 = vld [vmem:[%s223 + $0x10] sm:$0xff]
                %228 = vst [vmem:[%s224 + $0x8] sm:$0xff] %v227
                %v229 = vld [vmem:[%s223 + $0x20] sm:$0xff]
                %230 = vst [vmem:[%s224 + $0x10] sm:$0xff] %v229
                %v231 = vld [vmem:[%s223 + $0x30] sm:$0xff]
                %232 = vst [vmem:[%s224 + $0x18] sm:$0xff] %v231
                %v233 = vld [vmem:[%s223 + $0x40] sm:$0xff]
                %234 = vst [vmem:[%s224 + $0x20] sm:$0xff] %v233
              $region45: #{styled_conv_block2.6} parent=39 // loop_footer
                %s222 = sadd.s32 1, %s218
              $region46: #{styled_conv_block2.6} parent=39 // loop_footer_branch
                %217 = sbr.rel target = $region42
              $region47: #{styled_conv_block2.6} parent=39 // loop_exit
                _
            $region40: #{styled_conv_block2.6} parent=31 // pred_fallthru
              _
          $region32: #{styled_conv_block2.6} parent=27 // pred_fallthru
            _
          %257 = vnop
        $region28: #{styled_conv_block2.6} parent=23 // pred_fallthru
          _
      $region24: #{styled_conv_block2.6} parent=5 // pred_fallthru
        _
      %p258 = scmp.le.s32.totalorder 1, %s12
      %p259 = scmp.lt.s32.totalorder %s12, 5
      %p260 = pnand %p258, %p259
      %p261 = pneg %p260
      // Predicated region
      $region63: #{styled_conv_block2.6} parent=5 // pred_check
        _
      $region64: #{styled_conv_block2.6} parent=5 // pred_check_branch
        %263 = sbr.rel (%p260) target = $region66
      $region65: #{styled_conv_block2.6} parent=5 // pred_region
        %s264 = ssub.s32 %s12, 1
        %s265 = sand.u32 %s39, 1
        %s266 = sand.u32 %s39, 1
        %s267 = smul.addr %s266, 40
        %s268 = scalar_lea.vmem [#allocation2], %s267
        // Predicated region
        $region67: #{styled_conv_block2.6} parent=65 // pred_check
          %p269 = pneg %p52
        $region68: #{styled_conv_block2.6} parent=65 // pred_check_branch
          %271 = sbr.rel (%p269) target = $region70
        $region69: #{styled_conv_block2.6} parent=65 // pred_region
          _
        $region70: #{styled_conv_block2.6} parent=65 // pred_fallthru
          _
        %s272 = sand.u32 %s39, 1
        %s273 = sand.u32 %s39, 1
        %s274 = smul.addr %s273, 40
        %s275 = scalar_lea.vmem [#allocation2], %s274
        %p276 = pneg %p52
        %p277 = pneg %p49
        %p278 = pneg %p73
        %p279 = pneg %p70
        %p280 = pneg %p94
        %p281 = pneg %p91
        %p282 = pneg %p122
        %p283 = pneg %p119
        %p284 = scmp.lt.s32.totalorder %s21, 1
        %s285 = scalar_select %p284, %s21, 1
        %p286 = scmp.lt.s32.totalorder %s22, 1
        %s287 = scalar_select %p286, %s22, 1
        %s288 = smul.addr %s285, 2
        %s289 = sadd.s32 %s287, %s288
        %s290 = smul.addr %s289, 4
        %s291 = scalar_lea.vmem %s3, %s290
        %p292 = pneg %p148
        %p293 = pneg %p145
        %p294 = scmp.lt.s32.totalorder %s21, 1
        %s295 = scalar_select %p294, %s21, 1
        %s296 = smul.addr %s295, 4
        %s297 = scalar_lea.vmem %s4, %s296
        %p298 = pneg %p174
        %p299 = pneg %p171
        %p300 = scmp.lt.s32.totalorder %s21, 1
        %s301 = scalar_select %p300, %s21, 1
        %s302 = smul.addr %s301, 4
        %s303 = scalar_lea.vmem %s5, %s302
        %p304 = scmp.lt.s32.totalorder %s21, 1
        %s305 = scalar_select %p304, %s21, 1
        %p306 = scmp.lt.s32.totalorder %s22, 1
        %s307 = scalar_select %p306, %s22, 1
        %s308 = smul.addr %s305, 2
        %s309 = sadd.s32 %s307, %s308
        %s310 = smul.addr %s309, 4
        %s311 = scalar_lea.vmem %s3, %s310
        %p312 = scmp.lt.s32.totalorder %s21, 1
        %s313 = scalar_select %p312, %s21, 1
        %s314 = smul.addr %s313, 4
        %s315 = scalar_lea.vmem %s4, %s314
        %p316 = scmp.lt.s32.totalorder %s21, 1
        %s317 = scalar_select %p316, %s21, 1
        %s318 = smul.addr %s317, 4
        %s319 = scalar_lea.vmem %s5, %s318
        %v320 = vld [vmem:[%s268] sm:$0xff]
        %v321 = vld [vmem:[%s268 + $0x8] sm:$0xff]
        %v322 = vld [vmem:[%s268 + $0x10] sm:$0xff]
        %v323 = vld [vmem:[%s268 + $0x18] sm:$0xff]
        %v324 = vld [vmem:[%s268 + $0x20] sm:$0xf]
        %v325 = vld [vmem:[%s1] sm:$0xf]
        %v326 = vld [vmem:[%s2] sm:$0xf]
        %328 = vset.pattern.permute.xlu0 0
        %329 = vperm.xlu0 %328, %v326
        %v330 = vpop.permute.xlu0 %329
        %vm332 = vcmask 293888
        %v334 = vsel %vm332, %v325, 0
        %vm336 = vcmask 1043456
        %v338 = vsel %vm336, %v324, 0
        %340 = vmatprep.subr.mxu0 0.0
        %341 = vmatpush1.msra.mxu0 %v320
        %342 = vmatprep.subr.mxu0 0.0
        %343 = vmatpush1.msra.mxu0 %v321
        %344 = vmatprep.subr.mxu0 0.0
        %345 = vmatpush1.msra.mxu0 %v322
        %346 = vmatprep.subr.mxu0 0.0
        %347 = vmatpush1.msra.mxu0 %v323
        %348 = vmatprep.subr.mxu0 0.0
        %349 = vmatpush1.msra.mxu0 %v338
        %350 = vmatprep.subr.mxu0 0.0
        %351 = vmatpush1.msra.mxu0 0.0
        %352 = vmatprep.subr.mxu0 0.0
        %353 = vmatpush1.msra.mxu0 0.0
        %354 = vmatprep.subr.mxu0 0.0
        %355 = vmatpush1.msra.mxu0 0.0
        %356 = vmatprep.subr.mxu0 0.0
        %357 = vmatpush1.msra.mxu0 0.0
        %358 = vmatprep.subr.mxu0 0.0
        %359 = vmatpush1.msra.mxu0 0.0
        %360 = vmatprep.subr.mxu0 0.0
        %361 = vmatpush1.msra.mxu0 0.0
        %362 = vmatprep.subr.mxu0 0.0
        %363 = vmatpush1.msra.mxu0 0.0
        %364 = vmatprep.subr.mxu0 0.0
        %365 = vmatpush1.msra.mxu0 0.0
        %366 = vmatprep.subr.mxu0 0.0
        %367 = vmatpush1.msra.mxu0 0.0
        %368 = vmatprep.subr.mxu0 0.0
        %369 = vmatpush1.msra.mxu0 0.0
        %370 = vmatprep.subr.mxu0 0.0
        %371 = vmatpush1.msra.mxu0 0.0
        %372 = vmatprep.subr.mxu0 0.0
        %373 = vmatpush1.msra.mxu0 0.0
        %374 = vmatprep.subr.mxu0 0.0
        %375 = vmatpush1.msra.mxu0 0.0
        %376 = vmatprep.subr.mxu0 0.0
        %377 = vmatpush1.msra.mxu0 0.0
        %378 = vmatprep.subr.mxu0 0.0
        %379 = vmatpush1.msra.mxu0 0.0
        %380 = vmatprep.subr.mxu0 0.0
        %381 = vmatpush1.msra.mxu0 0.0
        %382 = vmatprep.subr.mxu0 0.0
        %383 = vmatpush1.msra.mxu0 0.0
        %384 = vmatprep.subr.mxu0 0.0
        %385 = vmatpush1.msra.mxu0 0.0
        %386 = vmatprep.subr.mxu0 0.0
        %387 = vmatpush1.msra.mxu0 0.0
        %388 = vmatprep.subr.mxu0 0.0
        %389 = vmatpush1.msra.mxu0 0.0
        %390 = vmatprep.subr.mxu0 0.0
        %391 = vmatpush1.msra.mxu0 0.0
        %392 = vmatprep.subr.mxu0 0.0
        %393 = vmatpush1.msra.mxu0 0.0
        %394 = vmatprep.subr.mxu0 0.0
        %395 = vmatpush1.msra.mxu0 0.0
        %396 = vmatprep.subr.mxu0 0.0
        %397 = vmatpush1.msra.mxu0 0.0
        %398 = vmatprep.subr.mxu0 0.0
        %399 = vmatpush1.msra.mxu0 0.0
        %400 = vmatprep.subr.mxu0 0.0
        %401 = vmatpush1.msra.mxu0 0.0
        %402 = vmatprep.subr.mxu0 0.0
        %403 = vmatpush1.msra.mxu0 0.0
        %404 = vmatprep.mubr.f32.mxu0 0.0
        %405 = vmatmul.mubr.f32.gmra.mrb[0].mxu0 %v334
        %v406 = vpop.f32.mrb[0].mxu0
        %v407 = vadd.f32 %v330, %v406
        %v408 = vpop.f32.mrb[0].mxu0
        %409 = vdwg.mxu0
        %410 = vst [vmem:[%s311] sm:$0xf] %v407
        %v411 = vsel %vm336, %v407, 0.0
        %412 = vadd.xlane.f32.xlu0 %v411
        %v413 = vpop.xlane.xlu0 %412
        %v414 = vmul.f32 %v407, %v407
        %v415 = vsel %vm336, %v414, 0.0
        %416 = vadd.xlane.f32.xlu0 %v415
        %v417 = vpop.xlane.xlu0 %416
        %p418 = scmp.eq.s32.totalorder %s22, 0
        // Predicated region
        $region71: #{styled_conv_block2.6} parent=65 // pred_check
          %p419 = pneg %p418
        $region72: #{styled_conv_block2.6} parent=65 // pred_check_branch
          %421 = sbr.rel (%p419) target = $region74
        $region73: #{styled_conv_block2.6} parent=65 // pred_region
          %vm422 = vcmask 3072
          %423 = vst.msk [vmem:[%s315] sm:$0xf] %vm422, %v413
          %424 = vst.msk [vmem:[%s319] sm:$0xf] %vm422, %v417
        $region74: #{styled_conv_block2.6} parent=65 // pred_fallthru
          _
        %p425 = scmp.ne.s32.totalorder %s22, 0
        // Predicated region
        $region75: #{styled_conv_block2.6} parent=65 // pred_check
          %p426 = pneg %p425
        $region76: #{styled_conv_block2.6} parent=65 // pred_check_branch
          %428 = sbr.rel (%p426) target = $region78
        $region77: #{styled_conv_block2.6} parent=65 // pred_region
          %v429 = vld [vmem:[%s315] sm:$0xf]
          %v430 = vadd.f32 %v429, %v413
          %vm431 = vcmask 3072
          %432 = vst.msk [vmem:[%s315] sm:$0xf] %vm431, %v430
          %v433 = vld [vmem:[%s319] sm:$0xf]
          %v434 = vadd.f32 %v433, %v417
          %435 = vst.msk [vmem:[%s319] sm:$0xf] %vm431, %v434
        $region78: #{styled_conv_block2.6} parent=65 // pred_fallthru
          _
        %p436 = scmp.lt.s32.totalorder %s21, 1
        %s437 = scalar_select %p436, %s21, 1
        %p438 = scmp.lt.s32.totalorder %s22, 1
        %s439 = scalar_select %p438, %s22, 1
        %s440 = smul.addr %s437, 2
        %s441 = sadd.s32 %s439, %s440
        %s442 = smul.addr %s441, 4
        %s443 = scalar_lea.vmem %s3, %s442
        %p444 = scmp.lt.s32.totalorder %s21, 1
        %s445 = scalar_select %p444, %s21, 1
        %s446 = smul.addr %s445, 4
        %s447 = scalar_lea.vmem %s4, %s446
        %p448 = scmp.lt.s32.totalorder %s21, 1
        %s449 = scalar_select %p448, %s21, 1
        %s450 = smul.addr %s449, 4
        %s451 = scalar_lea.vmem %s5, %s450
        // Predicated region
        $region79: #{styled_conv_block2.6} parent=65 // pred_check
          %p452 = pneg %p119
        $region80: #{styled_conv_block2.6} parent=65 // pred_check_branch
          %454 = sbr.rel (%p452) target = $region82
        $region81: #{styled_conv_block2.6} parent=65 // pred_region
          _
        $region82: #{styled_conv_block2.6} parent=65 // pred_fallthru
          _
        // Predicated region
        $region83: #{styled_conv_block2.6} parent=65 // pred_check
          %p455 = pneg %p145
        $region84: #{styled_conv_block2.6} parent=65 // pred_check_branch
          %457 = sbr.rel (%p455) target = $region86
        $region85: #{styled_conv_block2.6} parent=65 // pred_region
          _
        $region86: #{styled_conv_block2.6} parent=65 // pred_fallthru
          _
        // Predicated region
        $region87: #{styled_conv_block2.6} parent=65 // pred_check
          %p458 = pneg %p171
        $region88: #{styled_conv_block2.6} parent=65 // pred_check_branch
          %460 = sbr.rel (%p458) target = $region90
        $region89: #{styled_conv_block2.6} parent=65 // pred_region
          _
        $region90: #{styled_conv_block2.6} parent=65 // pred_fallthru
          _
      $region66: #{styled_conv_block2.6} parent=5 // pred_fallthru
        _
      %p461 = scmp.le.s32.totalorder 2, %s12
      // Predicated region
      $region91: #{styled_conv_block2.6} parent=5 // pred_check
        %p462 = pneg %p461
      $region92: #{styled_conv_block2.6} parent=5 // pred_check_branch
        %464 = sbr.rel (%p462) target = $region94
      $region93: #{styled_conv_block2.6} parent=5 // pred_region
        %s465 = ssub.s32 %s12, 2
        // Predicated region
        $region95: #{styled_conv_block2.6} parent=93 // pred_check
          %p466 = pneg %p125
        $region96: #{styled_conv_block2.6} parent=93 // pred_check_branch
          %468 = sbr.rel (%p466) target = $region98
        $region97: #{styled_conv_block2.6} parent=93 // pred_region
          %p469 = scmp.lt.s32.totalorder %s23, 1
          %s470 = scalar_select %p469, %s23, 1
          %p471 = scmp.lt.s32.totalorder %s24, 1
          %s472 = scalar_select %p471, %s24, 1
          %s473 = smul.addr %s470, 2
          %s474 = sadd.s32 %s472, %s473
          %s475 = smul.addr %s474, 4
          %s476 = scalar_lea.vmem %s3, %s475
        $region98: #{styled_conv_block2.6} parent=93 // pred_fallthru
          _
        // Predicated region
        $region99: #{styled_conv_block2.6} parent=93 // pred_check
          %p477 = pneg %p151
        $region100: #{styled_conv_block2.6} parent=93 // pred_check_branch
          %479 = sbr.rel (%p477) target = $region102
        $region101: #{styled_conv_block2.6} parent=93 // pred_region
          %p480 = scmp.lt.s32.totalorder %s23, 1
          %s481 = scalar_select %p480, %s23, 1
          %s482 = smul.addr %s481, 4
          %s483 = scalar_lea.vmem %s4, %s482
        $region102: #{styled_conv_block2.6} parent=93 // pred_fallthru
          _
        // Predicated region
        $region103: #{styled_conv_block2.6} parent=93 // pred_check
          %p484 = pneg %p177
        $region104: #{styled_conv_block2.6} parent=93 // pred_check_branch
          %486 = sbr.rel (%p484) target = $region106
        $region105: #{styled_conv_block2.6} parent=93 // pred_region
          %p487 = scmp.lt.s32.totalorder %s23, 1
          %s488 = scalar_select %p487, %s23, 1
          %s489 = smul.addr %s488, 4
          %s490 = scalar_lea.vmem %s5, %s489
        $region106: #{styled_conv_block2.6} parent=93 // pred_fallthru
          _
      $region94: #{styled_conv_block2.6} parent=5 // pred_fallthru
        _
    $region6: #{styled_conv_block2.6} parent=1 // loop_footer
      %s16 = sadd.s32 1, %s12
    $region7: #{styled_conv_block2.6} parent=1 // loop_footer_branch
      %11 = sbr.rel target = $region3
    $region8: #{styled_conv_block2.6} parent=1 // loop_exit
      _

// kernel: styled_conv_block2.7
$region0: #{styled_conv_block2.7}
  #allocation0 [shape = 'u32[]', space=smem, size = 0x4, offset = 0x4, fixed_abs, tag = 'smem constant byte address 0x4 - core index']
  #allocation1 [shape = 'u32[144,128]{1,0:T(1,128)}', space=vmem, size = 0x12000, scoped, tag = 'internal scratch']
  %s0 = inlined_call_operand.vmem [shape: f32[2,32], index: 0, kind: input, shape index: {}]
  %s1 = inlined_call_operand.vmem [shape: f32[32,8], index: 1, kind: input, shape index: {}]
  %s2 = inlined_call_operand.vmem [shape: f32[1,8], index: 2, kind: input, shape index: {}]
  %s3 = inlined_call_operand.vmem [shape: f32[2,8], index: 3, kind: output, shape index: {}]
  %s4 = sld [smem:[#allocation0]]
  $region22: #{styled_conv_block2.7} parent=0
    _
  %s6 = ssub.s32 1, %s4
  %s7 = scalar_select 0, %s6, %s4
  // Predicated region
  $region2: #{styled_conv_block2.7} parent=0 // pred_check
    _
  $region3: #{styled_conv_block2.7} parent=0 // pred_check_branch
    %9 = sbr.rel (0) target = $region5
  $region4: #{styled_conv_block2.7} parent=0 // pred_region
    _
  $region5: #{styled_conv_block2.7} parent=0 // pred_fallthru
    _
  // Predicated region
  $region6: #{styled_conv_block2.7} parent=0 // pred_check
    _
  $region7: #{styled_conv_block2.7} parent=0 // pred_check_branch
    %11 = sbr.rel (0) target = $region9
  $region8: #{styled_conv_block2.7} parent=0 // pred_region
    _
  $region9: #{styled_conv_block2.7} parent=0 // pred_fallthru
    _
  // Predicated region
  $region10: #{styled_conv_block2.7} parent=0 // pred_check
    _
  $region11: #{styled_conv_block2.7} parent=0 // pred_check_branch
    %13 = sbr.rel (0) target = $region13
  $region12: #{styled_conv_block2.7} parent=0 // pred_region
    _
  $region13: #{styled_conv_block2.7} parent=0 // pred_fallthru
    _
  %v14 = vld [vmem:[%s0] sm:$0x3]
  %v15 = vld [vmem:[%s1] sm:$0xff]
  %v16 = vld [vmem:[%s1 + $0x8] sm:$0xff]
  %v17 = vld [vmem:[%s1 + $0x10] sm:$0xff]
  %v18 = vld [vmem:[%s1 + $0x18] sm:$0xff]
  %v19 = vld [vmem:[%s2] sm:$0x1]
  %v21 = vlaneseq
  %v22 = vshrl.u32 %v21, 7
  %v23 = vsub.s32 0, %v22
  %v24 = vrot.slane %v19, %v23
  %vm26 = vcmask 261120
  %v28 = vsel %vm26, %v14, 0
  %30 = vmatprep.subr.mxu0 0.0
  %31 = vmatpush1.msra.mxu0 %v15
  %32 = vmatprep.subr.mxu0 0.0
  %33 = vmatpush1.msra.mxu0 %v16
  %34 = vmatprep.subr.mxu0 0.0
  %35 = vmatpush1.msra.mxu0 %v17
  %36 = vmatprep.subr.mxu0 0.0
  %37 = vmatpush1.msra.mxu0 %v18
  %38 = vmatprep.subr.mxu0 0.0
  %39 = vmatpush1.msra.mxu0 0.0
  %40 = vmatprep.subr.mxu0 0.0
  %41 = vmatpush1.msra.mxu0 0.0
  %42 = vmatprep.subr.mxu0 0.0
  %43 = vmatpush1.msra.mxu0 0.0
  %44 = vmatprep.subr.mxu0 0.0
  %45 = vmatpush1.msra.mxu0 0.0
  %46 = vmatprep.subr.mxu0 0.0
  %47 = vmatpush1.msra.mxu0 0.0
  %48 = vmatprep.subr.mxu0 0.0
  %49 = vmatpush1.msra.mxu0 0.0
  %50 = vmatprep.subr.mxu0 0.0
  %51 = vmatpush1.msra.mxu0 0.0
  %52 = vmatprep.subr.mxu0 0.0
  %53 = vmatpush1.msra.mxu0 0.0
  %54 = vmatprep.subr.mxu0 0.0
  %55 = vmatpush1.msra.mxu0 0.0
  %56 = vmatprep.subr.mxu0 0.0
  %57 = vmatpush1.msra.mxu0 0.0
  %58 = vmatprep.subr.mxu0 0.0
  %59 = vmatpush1.msra.mxu0 0.0
  %60 = vmatprep.subr.mxu0 0.0
  %61 = vmatpush1.msra.mxu0 0.0
  %62 = vmatprep.subr.mxu0 0.0
  %63 = vmatpush1.msra.mxu0 0.0
  %64 = vmatprep.subr.mxu0 0.0
  %65 = vmatpush1.msra.mxu0 0.0
  %66 = vmatprep.subr.mxu0 0.0
  %67 = vmatpush1.msra.mxu0 0.0
  %68 = vmatprep.subr.mxu0 0.0
  %69 = vmatpush1.msra.mxu0 0.0
  %70 = vmatprep.subr.mxu0 0.0
  %71 = vmatpush1.msra.mxu0 0.0
  %72 = vmatprep.subr.mxu0 0.0
  %73 = vmatpush1.msra.mxu0 0.0
  %74 = vmatprep.subr.mxu0 0.0
  %75 = vmatpush1.msra.mxu0 0.0
  %76 = vmatprep.subr.mxu0 0.0
  %77 = vmatpush1.msra.mxu0 0.0
  %78 = vmatprep.subr.mxu0 0.0
  %79 = vmatpush1.msra.mxu0 0.0
  %80 = vmatprep.subr.mxu0 0.0
  %81 = vmatpush1.msra.mxu0 0.0
  %82 = vmatprep.subr.mxu0 0.0
  %83 = vmatpush1.msra.mxu0 0.0
  %84 = vmatprep.subr.mxu0 0.0
  %85 = vmatpush1.msra.mxu0 0.0
  %86 = vmatprep.subr.mxu0 0.0
  %87 = vmatpush1.msra.mxu0 0.0
  %88 = vmatprep.subr.mxu0 0.0
  %89 = vmatpush1.msra.mxu0 0.0
  %90 = vmatprep.subr.mxu0 0.0
  %91 = vmatpush1.msra.mxu0 0.0
  %92 = vmatprep.subr.mxu0 0.0
  %93 = vmatpush1.msra.mxu0 0.0
  %94 = vmatprep.mubr.f32.mxu0 0.0
  %95 = vmatmul.mubr.f32.gmra.mrb[0].mxu0 %v28
  %v96 = vpop.f32.mrb[0].mxu0
  %v97 = vadd.f32 %v24, %v96
  %v98 = vpop.f32.mrb[0].mxu0
  %99 = vdwg.mxu0
  %vm100 = vcmask 58368
  %101 = vst.msk [vmem:[%s3] sm:$0x3] %vm100, %v97
  // Predicated region
  $region14: #{styled_conv_block2.7} parent=0 // pred_check
    _
  $region15: #{styled_conv_block2.7} parent=0 // pred_check_branch
    %103 = sbr.rel (0) target = $region17
  $region16: #{styled_conv_block2.7} parent=0 // pred_region
    _
  $region17: #{styled_conv_block2.7} parent=0 // pred_fallthru
    _
  // Predicated region
  $region18: #{styled_conv_block2.7} parent=0 // pred_check
    _
  $region19: #{styled_conv_block2.7} parent=0 // pred_check_branch
    %105 = sbr.rel (0) target = $region21
  $region20: #{styled_conv_block2.7} parent=0 // pred_region
    _
  $region21: #{styled_conv_block2.7} parent=0 // pred_fallthru
    _

</llo_original>
